<compile_context>
chip_gen: v7x
topology: tpu7x:2x2x1
jax: 0.10.0
libtpu: 0.0.40
codegen_flags: <defaults>
</compile_context>

<pallas_src>
import functools

import jax
import jax.numpy as jnp
from jax.experimental import pallas as pl
from jax.experimental.pallas import tpu as pltpu


def _mask_and_concat_kernel(coin_ref, row_ref, u_ref, con_ref, h_ref, w_ref,
                            b_ref, ori_ref, masked_ref, mask1_ref, mask2_ref,
                            *, mask_c, mask_h, input_dim):
    B, P = con_ref.shape
    T = w_ref.shape[1]

    # ---- fc + unbiased batch standardization (torch.std is ddof=1) ---------
    h_tr = jnp.dot(h_ref[...], w_ref[...],
                   preferred_element_type=jnp.float32) + b_ref[...]
    # two independent axis-0 reductions instead of mean -> (x-mean)^2 -> sum
    s1 = jnp.sum(h_tr, axis=0, keepdims=True)
    s2 = jnp.sum(h_tr * h_tr, axis=0, keepdims=True)
    mean = s1 * (1.0 / B)
    var = (s2 - s1 * mean) * (1.0 / (B - 1))
    # rsqrt runs on the otherwise-idle EUP.  NOTE: a batch-constant column
    # (std == 0) produces inf/nan exactly like the reference torch module.
    h_std = (h_tr - mean) * jax.lax.rsqrt(var)

    # ---- masks (built directly in final lane layout) ------------------------
    # branch A: Bernoulli mask over con_in
    m1_a = (u_ref[:, :P] >= mask_c).astype(jnp.float32)

    # branch B: drop one whole time-step row per batch element
    col = jax.lax.broadcasted_iota(jnp.int32, (B, P), 1)
    lo = row_ref[...] * input_dim                       # (B, 1) int32
    dropped = jnp.logical_and(col >= lo, col < lo + input_dim)
    m1_b = 1.0 - dropped.astype(jnp.float32)

    # global coin flip (same branch for the whole batch) from the SMEM scalar
    t = (coin_ref[0] != 0).astype(jnp.float32)
    m1 = t * m1_a + (1.0 - t) * m1_b
    m2 = (u_ref[:, P:] >= mask_h).astype(jnp.float32)   # both branches

    # ---- outputs: final user-facing arrays, no post-kernel slicing ----------
    mask1_ref[...] = m1
    mask2_ref[...] = m2
    ori_ref[:, :P] = con_ref[...]
    ori_ref[:, P:] = h_std
    masked_ref[:, :P] = con_ref[...] * m1
    masked_ref[:, P:] = h_std * m2


@functools.partial(jax.jit,
                   static_argnames=("mask_c", "mask_h", "step", "input_dim"))
def _forward(con_in, h_in, W, b, rng_key, *, mask_c, mask_h, step, input_dim):
    B, P = con_in.shape
    T = W.shape[1]
    PT = P + T

    # RNG in the same jit: one lane-layout-matched uniform slab, one row-drop
    # index per batch element, one coin bit for the task-1 branch.
    k_coin, k_u, k_row = jax.random.split(rng_key, 3)
    coin = (jax.random.uniform(k_coin, ()) >= 0.5).astype(jnp.int32).reshape(1)
    u = jax.random.uniform(k_u, (B, PT), jnp.float32)
    row = jax.random.randint(k_row, (B, 1), 0, step, dtype=jnp.int32)

    kernel = functools.partial(_mask_and_concat_kernel, mask_c=mask_c,
                               mask_h=mask_h, input_dim=input_dim)
    smem = pl.BlockSpec(memory_space=pltpu.MemorySpace.SMEM)
    vmem = pl.BlockSpec(memory_space=pltpu.MemorySpace.VMEM)

    # NOTE: single whole-array-resident invocation is right for these sizes.
    # If B or P+T ever scale up (especially on v7x's 64 MiB VMEM), switch to a
    # column grid ("parallel") with the batch reduction kept local per tile.
    ori, masked, m1, m2 = pl.pallas_call(
        kernel,
        out_shape=(jax.ShapeDtypeStruct((B, PT), jnp.float32),
                   jax.ShapeDtypeStruct((B, PT), jnp.float32),
                   jax.ShapeDtypeStruct((B, P), jnp.float32),
                   jax.ShapeDtypeStruct((B, T), jnp.float32)),
        in_specs=[smem, vmem, vmem, vmem, vmem, vmem, vmem],
        out_specs=(vmem, vmem, vmem, vmem),
    )(coin, row, u, con_in, h_in, W, b.reshape(1, T))

    return ori, masked, m1 > 0.5, m2 > 0.5


class MaskAndConcatJax:
    """JAX/Pallas port of MaskAndConcat (forward pass only)."""

    def __init__(self, mask_c, mask_h, tr_in, tr_out, tup, param_key):
        self.mask_c = float(mask_c)
        self.mask_h = float(mask_h)
        self.tup = (int(tup[0]), int(tup[1]))
        self.prod = self.tup[0] * self.tup[1]
        # deterministic synthetic param init (stand-in for nn.Linear init)
        kw, kb = jax.random.split(param_key)
        bound = 1.0 / (float(tr_in) ** 0.5)
        self.W = jax.random.uniform(kw, (tr_in, tr_out), jnp.float32,
                                    minval=-bound, maxval=bound)
        self.b = jax.random.uniform(kb, (tr_out,), jnp.float32,
                                    minval=-bound, maxval=bound)

    def __call__(self, con_in, h_in, rng_key):
        return _forward(con_in, h_in, self.W, self.b, rng_key,
                        mask_c=self.mask_c, mask_h=self.mask_h,
                        step=self.tup[0], input_dim=self.tup[1])


if __name__ == "__main__":
    # small shapes consistent with the module
    B = 8
    tup = (4, 8)              # (step, input_dim) -> prod = 32
    prod = tup[0] * tup[1]
    tr_in, tr_out = 16, 32
    mask_c, mask_h = 0.3, 0.3

    key = jax.random.PRNGKey(0)
    k_con, k_h, k_param, k_fwd = jax.random.split(key, 4)

    con_in = jax.random.normal(k_con, (B, prod), jnp.float32)
    h_in = jax.random.normal(k_h, (B, tr_in), jnp.float32)

    module = MaskAndConcatJax(mask_c, mask_h, tr_in, tr_out, tup, k_param)
    ori, masked, mask1, mask2 = module(con_in, h_in, k_fwd)
    jax.block_until_ready((ori, masked, mask1, mask2))

    # shape / dtype contract of the torch module
    assert ori.shape == (B, prod + tr_out)
    assert masked.shape == (B, prod + tr_out)
    assert mask1.shape == (B, prod) and mask1.dtype == jnp.bool_
    assert mask2.shape == (B, tr_out) and mask2.dtype == jnp.bool_

    # numerical sanity checks against the reference semantics
    assert bool(jnp.allclose(ori[:, :prod], con_in))
    full_mask = jnp.concatenate([mask1, mask2], axis=1).astype(jnp.float32)
    assert bool(jnp.allclose(masked, ori * full_mask, atol=1e-6))
    h_std = ori[:, prod:]
    assert bool(jnp.allclose(jnp.mean(h_std, axis=0), 0.0, atol=1e-4))
    assert bool(jnp.allclose(jnp.std(h_std, axis=0, ddof=1), 1.0, atol=1e-3))

    print("KERNEL_OK")
</pallas_src>

<mosaic_0001>
module attributes {stable_mosaic.version = 11 : i64} {
  func.func @_mask_and_concat_kernel(%arg0: memref<1xi32, #tpu.memory_space<smem>>, %arg1: memref<8x1xi32, #tpu.memory_space<vmem>>, %arg2: memref<8x64xf32, #tpu.memory_space<vmem>>, %arg3: memref<8x32xf32, #tpu.memory_space<vmem>>, %arg4: memref<8x16xf32, #tpu.memory_space<vmem>>, %arg5: memref<16x32xf32, #tpu.memory_space<vmem>>, %arg6: memref<1x32xf32, #tpu.memory_space<vmem>>, %arg7: memref<8x64xf32, #tpu.memory_space<vmem>>, %arg8: memref<8x64xf32, #tpu.memory_space<vmem>>, %arg9: memref<8x32xf32, #tpu.memory_space<vmem>>, %arg10: memref<8x32xf32, #tpu.memory_space<vmem>>) attributes {dimension_semantics = [], scalar_prefetch = 0 : i64, scratch_operands = 0 : i64, tpu.core_type = #tpu.core_type<tc>} {
    %c0 = arith.constant 0 : index
    %c0_0 = arith.constant 0 : index
    %0 = vector.load %arg4[%c0, %c0_0] : memref<8x16xf32, #tpu.memory_space<vmem>>, vector<8x16xf32>
    %c0_1 = arith.constant 0 : index
    %c0_2 = arith.constant 0 : index
    %1 = vector.load %arg5[%c0_1, %c0_2] : memref<16x32xf32, #tpu.memory_space<vmem>>, vector<16x32xf32>
    %cst = arith.constant dense<0.000000e+00> : vector<8x32xf32>
    %2 = tpu.matmul %0, %1, %cst {dimension_numbers = #tpu.dot_dimension_numbers<[1], [0], [0], [1], [0, 0, 1, 1], [], []>} : vector<8x16xf32>, vector<16x32xf32>, vector<8x32xf32> -> vector<8x32xf32>
    %c0_3 = arith.constant 0 : index
    %c0_4 = arith.constant 0 : index
    %3 = vector.load %arg6[%c0_3, %c0_4] : memref<1x32xf32, #tpu.memory_space<vmem>>, vector<1x32xf32>
    %4 = vector.broadcast %3 : vector<1x32xf32> to vector<8x32xf32>
    %5 = arith.addf %2, %4 : vector<8x32xf32>
    %cst_5 = arith.constant dense<0.000000e+00> : vector<32xf32>
    %6 = vector.multi_reduction <add>, %5, %cst_5 [0] : vector<8x32xf32> to vector<32xf32>
    %7 = vector.shape_cast %6 : vector<32xf32> to vector<1x32xf32>
    %8 = arith.mulf %5, %5 : vector<8x32xf32>
    %cst_6 = arith.constant dense<0.000000e+00> : vector<32xf32>
    %9 = vector.multi_reduction <add>, %8, %cst_6 [0] : vector<8x32xf32> to vector<32xf32>
    %10 = vector.shape_cast %9 : vector<32xf32> to vector<1x32xf32>
    %cst_7 = arith.constant 1.250000e-01 : f32
    %11 = vector.broadcast %cst_7 : f32 to vector<1x32xf32>
    %12 = arith.mulf %7, %11 : vector<1x32xf32>
    %13 = arith.mulf %7, %12 : vector<1x32xf32>
    %14 = arith.subf %10, %13 : vector<1x32xf32>
    %cst_8 = arith.constant 0.142857149 : f32
    %15 = vector.broadcast %cst_8 : f32 to vector<1x32xf32>
    %16 = arith.mulf %14, %15 : vector<1x32xf32>
    %17 = vector.broadcast %12 : vector<1x32xf32> to vector<8x32xf32>
    %18 = arith.subf %5, %17 : vector<8x32xf32>
    %19 = math.rsqrt %16 : vector<1x32xf32>
    %20 = vector.broadcast %19 : vector<1x32xf32> to vector<8x32xf32>
    %21 = arith.mulf %18, %20 : vector<8x32xf32>
    %c0_9 = arith.constant 0 : index
    %c0_10 = arith.constant 0 : index
    %22 = vector.load %arg2[%c0_9, %c0_10] : memref<8x64xf32, #tpu.memory_space<vmem>>, vector<8x32xf32>
    %cst_11 = arith.constant 3.000000e-01 : f32
    %23 = vector.broadcast %cst_11 : f32 to vector<8x32xf32>
    %24 = arith.cmpf oge, %22, %23 : vector<8x32xf32>
    %25 = arith.extui %24 : vector<8x32xi1> to vector<8x32xi32>
    %26 = arith.sitofp %25 : vector<8x32xi32> to vector<8x32xf32>
    %27 = tpu.iota {dimensions = array<i32: 1>} : vector<8x32xi32>
    %c0_12 = arith.constant 0 : index
    %c0_13 = arith.constant 0 : index
    %28 = vector.load %arg1[%c0_12, %c0_13] : memref<8x1xi32, #tpu.memory_space<vmem>>, vector<8x1xi32>
    %c8_i32 = arith.constant 8 : i32
    %29 = vector.broadcast %c8_i32 : i32 to vector<8x1xi32>
    %30 = arith.muli %28, %29 : vector<8x1xi32>
    %31 = vector.broadcast %30 : vector<8x1xi32> to vector<8x32xi32>
    %32 = arith.cmpi sge, %27, %31 : vector<8x32xi32>
    %c8_i32_14 = arith.constant 8 : i32
    %33 = vector.broadcast %c8_i32_14 : i32 to vector<8x1xi32>
    %34 = arith.addi %30, %33 : vector<8x1xi32>
    %35 = vector.broadcast %34 : vector<8x1xi32> to vector<8x32xi32>
    %36 = arith.cmpi slt, %27, %35 : vector<8x32xi32>
    %37 = arith.andi %32, %36 : vector<8x32xi1>
    %38 = arith.extui %37 : vector<8x32xi1> to vector<8x32xi32>
    %39 = arith.sitofp %38 : vector<8x32xi32> to vector<8x32xf32>
    %cst_15 = arith.constant 1.000000e+00 : f32
    %40 = vector.broadcast %cst_15 : f32 to vector<8x32xf32>
    %41 = arith.subf %40, %39 : vector<8x32xf32>
    %c0_16 = arith.constant 0 : index
    %42 = memref.load %arg0[%c0_16] : memref<1xi32, #tpu.memory_space<smem>>
    %c0_i32 = arith.constant 0 : i32
    %43 = arith.cmpi ne, %42, %c0_i32 : i32
    %44 = arith.extui %43 : i1 to i32
    %45 = arith.sitofp %44 : i32 to f32
    %46 = vector.broadcast %45 : f32 to vector<8x32xf32>
    %47 = arith.mulf %46, %26 : vector<8x32xf32>
    %cst_17 = arith.constant 1.000000e+00 : f32
    %48 = arith.subf %cst_17, %45 : f32
    %49 = vector.broadcast %48 : f32 to vector<8x32xf32>
    %50 = arith.mulf %49, %41 : vector<8x32xf32>
    %51 = arith.addf %47, %50 : vector<8x32xf32>
    %c0_18 = arith.constant 0 : index
    %c32 = arith.constant 32 : index
    %52 = vector.load %arg2[%c0_18, %c32] : memref<8x64xf32, #tpu.memory_space<vmem>>, vector<8x32xf32>
    %cst_19 = arith.constant 3.000000e-01 : f32
    %53 = vector.broadcast %cst_19 : f32 to vector<8x32xf32>
    %54 = arith.cmpf oge, %52, %53 : vector<8x32xf32>
    %55 = arith.extui %54 : vector<8x32xi1> to vector<8x32xi32>
    %56 = arith.sitofp %55 : vector<8x32xi32> to vector<8x32xf32>
    %c0_20 = arith.constant 0 : index
    %c0_21 = arith.constant 0 : index
    %57 = vector.load %arg9[%c0_20, %c0_21] : memref<8x32xf32, #tpu.memory_space<vmem>>, vector<8x32xf32>
    tpu.vector_store %arg9[%c0_20, %c0_21], %51 {strides = array<i32>} : memref<8x32xf32, #tpu.memory_space<vmem>>, vector<8x32xf32>,
    %c0_22 = arith.constant 0 : index
    %c0_23 = arith.constant 0 : index
    %58 = vector.load %arg10[%c0_22, %c0_23] : memref<8x32xf32, #tpu.memory_space<vmem>>, vector<8x32xf32>
    tpu.vector_store %arg10[%c0_22, %c0_23], %56 {strides = array<i32>} : memref<8x32xf32, #tpu.memory_space<vmem>>, vector<8x32xf32>,
    %c0_24 = arith.constant 0 : index
    %c0_25 = arith.constant 0 : index
    %59 = vector.load %arg3[%c0_24, %c0_25] : memref<8x32xf32, #tpu.memory_space<vmem>>, vector<8x32xf32>
    %c0_26 = arith.constant 0 : index
    %c0_27 = arith.constant 0 : index
    %60 = vector.load %arg7[%c0_26, %c0_27] : memref<8x64xf32, #tpu.memory_space<vmem>>, vector<8x32xf32>
    tpu.vector_store %arg7[%c0_26, %c0_27], %59 {strides = array<i32>} : memref<8x64xf32, #tpu.memory_space<vmem>>, vector<8x32xf32>,
    %c0_28 = arith.constant 0 : index
    %c32_29 = arith.constant 32 : index
    %61 = vector.load %arg7[%c0_28, %c32_29] : memref<8x64xf32, #tpu.memory_space<vmem>>, vector<8x32xf32>
    tpu.vector_store %arg7[%c0_28, %c32_29], %21 {strides = array<i32>} : memref<8x64xf32, #tpu.memory_space<vmem>>, vector<8x32xf32>,
    %c0_30 = arith.constant 0 : index
    %c0_31 = arith.constant 0 : index
    %62 = vector.load %arg3[%c0_30, %c0_31] : memref<8x32xf32, #tpu.memory_space<vmem>>, vector<8x32xf32>
    %63 = arith.mulf %62, %51 : vector<8x32xf32>
    %c0_32 = arith.constant 0 : index
    %c0_33 = arith.constant 0 : index
    %64 = vector.load %arg8[%c0_32, %c0_33] : memref<8x64xf32, #tpu.memory_space<vmem>>, vector<8x32xf32>
    tpu.vector_store %arg8[%c0_32, %c0_33], %63 {strides = array<i32>} : memref<8x64xf32, #tpu.memory_space<vmem>>, vector<8x32xf32>,
    %65 = arith.mulf %21, %56 : vector<8x32xf32>
    %c0_34 = arith.constant 0 : index
    %c32_35 = arith.constant 32 : index
    %66 = vector.load %arg8[%c0_34, %c32_35] : memref<8x64xf32, #tpu.memory_space<vmem>>, vector<8x32xf32>
    tpu.vector_store %arg8[%c0_34, %c32_35], %65 {strides = array<i32>} : memref<8x64xf32, #tpu.memory_space<vmem>>, vector<8x32xf32>,
    return
  }
}

</mosaic_0001>

<llo_original>
// kernel: _forward.3
$region0: #{_forward.3}
  #allocation0 [shape = 'u32[]', space=smem, size = 0x4, offset = 0x4, fixed_abs, tag = 'smem constant byte address 0x4 - core index']
  #allocation1 [shape = 'u32[144,128]{1,0:T(1,128)}', space=vmem, size = 0x12000, scoped, tag = 'internal scratch']
  #allocation2 [shape = 's32[1]{0:T(128)S(6)}', space=smem, size = 0x200, scoped, tag = 'scoped memory for _forward.3']
  %s0 = inlined_call_operand.<no memory space> [shape: s32[1], index: 0, kind: input, shape index: {}]
  %s1 = inlined_call_operand.vmem [shape: s32[8,1], index: 1, kind: input, shape index: {}]
  %s2 = inlined_call_operand.vmem [shape: f32[8,64], index: 2, kind: input, shape index: {}]
  %s3 = inlined_call_operand.vmem [shape: f32[8,32], index: 3, kind: input, shape index: {}]
  %s4 = inlined_call_operand.vmem [shape: f32[8,16], index: 4, kind: input, shape index: {}]
  %s5 = inlined_call_operand.vmem [shape: f32[16,32], index: 5, kind: input, shape index: {}]
  %s6 = inlined_call_operand.vmem [shape: f32[1,32], index: 6, kind: input, shape index: {}]
  %s7 = inlined_call_operand.hbm [shape: f32[8,64], index: 7, kind: output, shape index: {0}]
  %s8 = inlined_call_operand.hbm [shape: f32[8,64], index: 8, kind: output, shape index: {1}]
  %s9 = inlined_call_operand.vmem [shape: f32[8,32], index: 9, kind: output, shape index: {2}]
  %s10 = inlined_call_operand.vmem [shape: f32[8,32], index: 10, kind: output, shape index: {3}]
  %11 = xla_tuple %s7, %s8, %s9, %s10
  %s12 = sld [smem:[#allocation0]]
  $region62: #{_forward.3} parent=0
    _
  %s14 = ssub.s32 1, %s12
  %s15 = scalar_select 0, %s14, %s12
  %16 = sst [smem:[#allocation2]] %s0
  $region1: #{_forward.3} parent=0
    #allocation3 [shape = 'u8[4096]{0}', space=vmem, size = 0x1000, scoped, tag = 'output window, operand 0, single buffered']
    #allocation4 [shape = 's32[1]{0}', space=sflag, size = 0x4, scoped, tag = 'scoped memory for _forward.3']
    #allocation5 [shape = 'u8[4096]{0}', space=vmem, size = 0x1000, scoped, tag = 'output window, operand 1, single buffered']
    #allocation6 [shape = 's32[1]{0}', space=sflag, size = 0x4, scoped, tag = 'scoped memory for _forward.3']
    %17 = vsyncpa [#allocation4], 0
    %18 = vsyncpa [#allocation6], 0
    // Predicated region
    $region2: #{_forward.3} parent=1 // pred_check
      _
    $region3: #{_forward.3} parent=1 // pred_check_branch
      %20 = sbr.rel (0) target = $region5
    $region4: #{_forward.3} parent=1 // pred_region
      _
    $region5: #{_forward.3} parent=1 // pred_fallthru
      _
    // Predicated region
    $region6: #{_forward.3} parent=1 // pred_check
      _
    $region7: #{_forward.3} parent=1 // pred_check_branch
      %22 = sbr.rel (0) target = $region9
    $region8: #{_forward.3} parent=1 // pred_region
      _
    $region9: #{_forward.3} parent=1 // pred_fallthru
      _
    // Predicated region
    $region10: #{_forward.3} parent=1 // pred_check
      _
    $region11: #{_forward.3} parent=1 // pred_check_branch
      %24 = sbr.rel (0) target = $region13
    $region12: #{_forward.3} parent=1 // pred_region
      _
    $region13: #{_forward.3} parent=1 // pred_fallthru
      _
    // Predicated region
    $region14: #{_forward.3} parent=1 // pred_check
      _
    $region15: #{_forward.3} parent=1 // pred_check_branch
      %26 = sbr.rel (0) target = $region17
    $region16: #{_forward.3} parent=1 // pred_region
      _
    $region17: #{_forward.3} parent=1 // pred_fallthru
      _
    // Predicated region
    $region18: #{_forward.3} parent=1 // pred_check
      _
    $region19: #{_forward.3} parent=1 // pred_check_branch
      %28 = sbr.rel (0) target = $region21
    $region20: #{_forward.3} parent=1 // pred_region
      _
    $region21: #{_forward.3} parent=1 // pred_fallthru
      _
    // Predicated region
    $region22: #{_forward.3} parent=1 // pred_check
      _
    $region23: #{_forward.3} parent=1 // pred_check_branch
      %30 = sbr.rel (0) target = $region25
    $region24: #{_forward.3} parent=1 // pred_region
      _
    $region25: #{_forward.3} parent=1 // pred_fallthru
      _
    // Predicated region
    $region26: #{_forward.3} parent=1 // pred_check
      _
    $region27: #{_forward.3} parent=1 // pred_check_branch
      %32 = sbr.rel (0) target = $region29
    $region28: #{_forward.3} parent=1 // pred_region
      _
    $region29: #{_forward.3} parent=1 // pred_fallthru
      _
    %v33 = vld [vmem:[%s4] sm:$0xff]
    %v34 = vld [vmem:[%s5] sm:$0xff]
    %v35 = vld [vmem:[%s5 + $0x8] sm:$0xff]
    %v36 = vld [vmem:[%s6] sm:$0x1]
    %v38 = vlaneseq
    %v39 = vshrl.u32 %v38, 7
    %v40 = vsub.s32 0, %v39
    %v41 = vrot.slane %v36, %v40
    %vm43 = vcmask 130048
    %v45 = vsel %vm43, %v33, 0
    %47 = vmatprep.subr.mxu0 0.0
    %48 = vmatpush1.msra.mxu0 %v34
    %49 = vmatprep.subr.mxu0 0.0
    %50 = vmatpush1.msra.mxu0 %v35
    %51 = vmatprep.subr.mxu0 0.0
    %52 = vmatpush1.msra.mxu0 0.0
    %53 = vmatprep.subr.mxu0 0.0
    %54 = vmatpush1.msra.mxu0 0.0
    %55 = vmatprep.subr.mxu0 0.0
    %56 = vmatpush1.msra.mxu0 0.0
    %57 = vmatprep.subr.mxu0 0.0
    %58 = vmatpush1.msra.mxu0 0.0
    %59 = vmatprep.subr.mxu0 0.0
    %60 = vmatpush1.msra.mxu0 0.0
    %61 = vmatprep.subr.mxu0 0.0
    %62 = vmatpush1.msra.mxu0 0.0
    %63 = vmatprep.subr.mxu0 0.0
    %64 = vmatpush1.msra.mxu0 0.0
    %65 = vmatprep.subr.mxu0 0.0
    %66 = vmatpush1.msra.mxu0 0.0
    %67 = vmatprep.subr.mxu0 0.0
    %68 = vmatpush1.msra.mxu0 0.0
    %69 = vmatprep.subr.mxu0 0.0
    %70 = vmatpush1.msra.mxu0 0.0
    %71 = vmatprep.subr.mxu0 0.0
    %72 = vmatpush1.msra.mxu0 0.0
    %73 = vmatprep.subr.mxu0 0.0
    %74 = vmatpush1.msra.mxu0 0.0
    %75 = vmatprep.subr.mxu0 0.0
    %76 = vmatpush1.msra.mxu0 0.0
    %77 = vmatprep.subr.mxu0 0.0
    %78 = vmatpush1.msra.mxu0 0.0
    %79 = vmatprep.subr.mxu0 0.0
    %80 = vmatpush1.msra.mxu0 0.0
    %81 = vmatprep.subr.mxu0 0.0
    %82 = vmatpush1.msra.mxu0 0.0
    %83 = vmatprep.subr.mxu0 0.0
    %84 = vmatpush1.msra.mxu0 0.0
    %85 = vmatprep.subr.mxu0 0.0
    %86 = vmatpush1.msra.mxu0 0.0
    %87 = vmatprep.subr.mxu0 0.0
    %88 = vmatpush1.msra.mxu0 0.0
    %89 = vmatprep.subr.mxu0 0.0
    %90 = vmatpush1.msra.mxu0 0.0
    %91 = vmatprep.subr.mxu0 0.0
    %92 = vmatpush1.msra.mxu0 0.0
    %93 = vmatprep.subr.mxu0 0.0
    %94 = vmatpush1.msra.mxu0 0.0
    %95 = vmatprep.subr.mxu0 0.0
    %96 = vmatpush1.msra.mxu0 0.0
    %97 = vmatprep.subr.mxu0 0.0
    %98 = vmatpush1.msra.mxu0 0.0
    %99 = vmatprep.subr.mxu0 0.0
    %100 = vmatpush1.msra.mxu0 0.0
    %101 = vmatprep.subr.mxu0 0.0
    %102 = vmatpush1.msra.mxu0 0.0
    %103 = vmatprep.subr.mxu0 0.0
    %104 = vmatpush1.msra.mxu0 0.0
    %105 = vmatprep.subr.mxu0 0.0
    %106 = vmatpush1.msra.mxu0 0.0
    %107 = vmatprep.subr.mxu0 0.0
    %108 = vmatpush1.msra.mxu0 0.0
    %109 = vmatprep.subr.mxu0 0.0
    %110 = vmatpush1.msra.mxu0 0.0
    %111 = vmatprep.mubr.f32.mxu0 0.0
    %112 = vmatmul.mubr.f32.gmra.mrb[0].mxu0 %v45
    %v113 = vpop.f32.mrb[0].mxu0
    %v114 = vadd.f32 %v41, %v113
    %v115 = vpop.f32.mrb[0].mxu0
    %116 = vdwg.mxu0
    %vm117 = vcmask 261120
    %v118 = vsel %vm117, %v114, 0.0
    %v119 = vrot.slane %v118, 4
    %v120 = vadd.f32 %v118, %v119
    %v121 = vrot.slane %v120, 2
    %v122 = vadd.f32 %v120, %v121
    %v123 = vrot.slane %v122, 1
    %v124 = vadd.f32 %v122, %v123
    %v125 = vmul.f32 %v114, %v114
    %v126 = vsel %vm117, %v125, 0.0
    %v127 = vrot.slane %v126, 4
    %v128 = vadd.f32 %v126, %v127
    %v129 = vrot.slane %v128, 2
    %v130 = vadd.f32 %v128, %v129
    %v131 = vrot.slane %v130, 1
    %v132 = vadd.f32 %v130, %v131
    %v133 = vmul.f32 %v124, 0.125
    %v134 = vmul.f32 %v124, %v133
    %v135 = vsub.f32 %v132, %v134
    %v136 = vmul.f32 %v135, 0.14285715
    %v137 = vsub.f32 %v114, %v133
    %v138 = vrsqrt.pop %v136
    %v139 = vmul.f32 %v137, %v138
    %v140 = vld [vmem:[%s2] sm:$0xff]
    %vm141 = vcmp.ge.f32.partialorder %v140, 0.3
    %v142 = vsel %vm141, 1, 0
    %v143 = vcvt.s32.f32 %v142
    %v144 = vlaneseq
    %v145 = vand.u32 %v144, 127
    %v146 = vld [vmem:[%s1] sm:$0xff]
    %v147 = vmul.u32 %v146, 8
    %148 = vset.pattern.permute.xlu0 0
    %149 = vperm.xlu0 %148, %v147
    %v150 = vpop.permute.xlu0 %149
    %vm151 = vcmp.ge.s32.totalorder %v145, %v150
    %v152 = vadd.s32 %v147, 8
    %153 = vset.pattern.permute.xlu0 0
    %154 = vperm.xlu0 %153, %v152
    %v155 = vpop.permute.xlu0 %154
    %vm156 = vcmp.lt.s32.totalorder %v145, %v155
    %vm157 = vmand %vm151, %vm156
    %v158 = vsel %vm157, 1, 0
    %v159 = vcvt.s32.f32 %v158
    %v160 = vsub.f32 1.0, %v159
    %s161 = sld [smem:[#allocation2]]
    %p162 = scmp.ne.s32.totalorder %s161, 0
    %s163 = scalar_select %p162, 1, 0
    %s164 = scvt.s32.f32 %s163
    %v165 = vstv %s164
    %v166 = vmul.f32 %v165, %v143
    %s167 = ssub.f32 1.0, %s164
    %v168 = vstv %s167
    %v169 = vmul.f32 %v168, %v160
    %v170 = vadd.f32 %v166, %v169
    %171 = vst.msk [vmem:[%s9] sm:$0xff] %vm117, %v170
    %173 = vrot.lane.b32.xlu0 %v143, 96
    %v174 = vpop.permute.xlu0 %173
    %176 = vst.msk [vmem:[%s10] sm:$0xff] %vm117, %v174
    %v177 = vld [vmem:[%s3] sm:$0xff]
    %178 = vst.msk [vmem:[#allocation3] sm:$0xff] %vm117, %v177
    %180 = vrot.lane.b32.xlu0 %v139, 32
    %v181 = vpop.permute.xlu0 %180
    %vm183 = vcmask 523520
    %184 = vst.msk [vmem:[#allocation3] sm:$0xff] %vm183, %v181
    %v185 = vld [vmem:[%s3] sm:$0xff]
    %v186 = vmul.f32 %v185, %v170
    %187 = vst.msk [vmem:[#allocation5] sm:$0xff] %vm117, %v186
    %v188 = vmul.f32 %v139, %v174
    %190 = vrot.lane.b32.xlu0 %v188, 32
    %v191 = vpop.permute.xlu0 %190
    %193 = vst.msk [vmem:[#allocation5] sm:$0xff] %vm183, %v191
    // Predicated region
    $region30: #{_forward.3} parent=1 // pred_check
      _
    $region31: #{_forward.3} parent=1 // pred_check_branch
      %195 = sbr.rel (0) target = $region33
    $region32: #{_forward.3} parent=1 // pred_region
      %s197 = ssub.s32 128, 128
      %198 = vsyncadd [#allocation4], %s197
      %s200 = sshll.u32 [#allocation3], 4
      %s201 = int_to_ptr.vmem [resolvable:$true] %s200
      %203 = dma.vmem_to_hbm [thread:$0]  %s201, 128, %s7, [#allocation4]
    $region33: #{_forward.3} parent=1 // pred_fallthru
      _
    // Predicated region
    $region34: #{_forward.3} parent=1 // pred_check
      _
    $region35: #{_forward.3} parent=1 // pred_check_branch
      %205 = sbr.rel (0) target = $region37
    $region36: #{_forward.3} parent=1 // pred_region
      %s207 = ssub.s32 128, 128
      %208 = vsyncadd [#allocation6], %s207
      %s210 = sshll.u32 [#allocation5], 4
      %s211 = int_to_ptr.vmem [resolvable:$true] %s210
      %213 = dma.vmem_to_hbm [thread:$0]  %s211, 128, %s8, [#allocation6]
    $region37: #{_forward.3} parent=1 // pred_fallthru
      _
    // Predicated region
    $region38: #{_forward.3} parent=1 // pred_check
      _
    $region39: #{_forward.3} parent=1 // pred_check_branch
      %215 = sbr.rel (0) target = $region41
    $region40: #{_forward.3} parent=1 // pred_region
      _
    $region41: #{_forward.3} parent=1 // pred_fallthru
      _
    // Predicated region
    $region42: #{_forward.3} parent=1 // pred_check
      _
    $region43: #{_forward.3} parent=1 // pred_check_branch
      %217 = sbr.rel (0) target = $region45
    $region44: #{_forward.3} parent=1 // pred_region
      _
    $region45: #{_forward.3} parent=1 // pred_fallthru
      _
    // Predicated region
    $region46: #{_forward.3} parent=1 // pred_check
      _
    $region47: #{_forward.3} parent=1 // pred_check_branch
      %219 = sbr.rel (0) target = $region49
    $region48: #{_forward.3} parent=1 // pred_region
      %220 = dma.done [#allocation4], 128
    $region49: #{_forward.3} parent=1 // pred_fallthru
      _
    // Predicated region
    $region50: #{_forward.3} parent=1 // pred_check
      _
    $region51: #{_forward.3} parent=1 // pred_check_branch
      %222 = sbr.rel (0) target = $region53
    $region52: #{_forward.3} parent=1 // pred_region
      %223 = dma.done [#allocation6], 128
    $region53: #{_forward.3} parent=1 // pred_fallthru
      _
    // Predicated region
    $region54: #{_forward.3} parent=1 // pred_check
      _
    $region55: #{_forward.3} parent=1 // pred_check_branch
      %225 = sbr.rel (0) target = $region57
    $region56: #{_forward.3} parent=1 // pred_region
      _
    $region57: #{_forward.3} parent=1 // pred_fallthru
      _
    // Predicated region
    $region58: #{_forward.3} parent=1 // pred_check
      _
    $region59: #{_forward.3} parent=1 // pred_check_branch
      %227 = sbr.rel (0) target = $region61
    $region60: #{_forward.3} parent=1 // pred_region
      _
    $region61: #{_forward.3} parent=1 // pred_fallthru
      _
    %228 = vsyncpa [#allocation4], 1
    %229 = vsyncpa [#allocation6], 1

</llo_original>
